<compile_context>
chip_gen: v7x
topology: tpu7x:2x2x1
jax: 0.10.0
libtpu: 0.0.40
codegen_flags: <defaults>
</compile_context>

<pallas_src>
import jax
import jax.numpy as jnp
import numpy as np
from jax.experimental import pallas as pl
from jax.experimental.pallas import tpu as pltpu

F_IN, F_HID, F_OUT = 2, 5, 2
FP = 128        # lane-pad the hidden feature dim (5 -> 128) for lane-dense MXU tiles


def _gcn2_kernel(x_ref, adj_ref, w1_ref, b1_ref, w2_ref, b2_ref, out_ref):
    """Fused 2-layer graph convolution; G graphs per grid step.

    x_ref:   [G, N, F_IN]   node features
    adj_ref: [G, N, N]      (normalized) adjacency
    w1_ref:  [F_IN, FP]     layer-1 weight (real block [F_IN, F_HID], rest zero)
    b1_ref:  [1, FP]        layer-1 bias   (first F_HID entries real)
    w2_ref:  [FP, F_OUT]    layer-2 weight (real block [F_HID, F_OUT], rest zero)
    b2_ref:  [1, F_OUT]     layer-2 bias
    out_ref: [G, N, F_OUT]  sigmoid output (real width, no padding)
    """
    G = adj_ref.shape[0]
    w1 = w1_ref[...]
    b1 = b1_ref[...]
    w2 = w2_ref[...]
    b2 = b2_ref[...]

    # Static unroll over the G graphs packed into this grid step (G is small).
    # Each graph has its own adjacency, so the adj matmuls cannot be merged;
    # 2-D f32 MXU dots throughout, f32 accumulate.
    for g in range(G):
        x = x_ref[g]        # [N, F_IN]
        adj = adj_ref[g]    # [N, N]

        # --- layer 1: h = relu(adj @ (x @ W1) + b1) ---
        s1 = jnp.dot(x, w1, preferred_element_type=jnp.float32)          # [N, FP]
        h = jnp.dot(adj, s1, preferred_element_type=jnp.float32) + b1
        h = jnp.maximum(h, 0.0)

        # --- layer 2: o = sigmoid(adj @ (h @ W2) + b2) ---
        s2 = jnp.dot(h, w2, preferred_element_type=jnp.float32)          # [N, F_OUT]
        o = jnp.dot(adj, s2, preferred_element_type=jnp.float32) + b2
        out_ref[g] = jax.nn.sigmoid(o)


def _graphs_per_step(batch):
    """Largest divisor of `batch` that keeps the grid length >= 2.

    Grid length >= 2 lets dimension_semantics=("parallel",) feed both
    TensorCores on v7x; packing several graphs per step amortizes the fixed
    per-grid-step pipeline overhead on all generations.  batch <= 1 -> 1.
    """
    if batch <= 1:
        return 1
    for g in range(batch // 2, 0, -1):
        if batch % g == 0:
            return g
    return 1


def make_generator_ft2(w1, b1, w2, b2):
    """Pads parameters ONCE and returns a jitted forward(x, adj).

    forward accepts a single graph (x:[N,F_IN], adj:[N,N]) -- matching the
    PyTorch module -- or a batch of graphs (x:[B,N,F_IN], adj:[B,N,N]).
    """
    # --- parameter padding hoisted out of the per-call path ---
    w1_np = np.zeros((F_IN, FP), np.float32)
    w1_np[:, :F_HID] = np.asarray(w1, np.float32)
    b1_np = np.zeros((1, FP), np.float32)
    b1_np[0, :F_HID] = np.asarray(b1, np.float32)
    w2_np = np.zeros((FP, F_OUT), np.float32)
    w2_np[:F_HID, :] = np.asarray(w2, np.float32)
    b2_np = np.asarray(b2, np.float32).reshape(1, F_OUT)
    w1_p, b1_p, w2_p, b2_p = map(jnp.asarray, (w1_np, b1_np, w2_np, b2_np))

    @jax.jit
    def forward(x, adj):
        single = x.ndim == 2
        if single:
            x = x[None]
            adj = adj[None]
        B, N, _ = x.shape
        G = _graphs_per_step(B)          # graphs per grid step
        grid = (B // G,)

        out = pl.pallas_call(
            _gcn2_kernel,
            out_shape=jax.ShapeDtypeStruct((B, N, F_OUT), jnp.float32),
            grid=grid,
            in_specs=[
                pl.BlockSpec((G, N, F_IN), lambda b: (b, 0, 0)),
                pl.BlockSpec((G, N, N), lambda b: (b, 0, 0)),
                pl.BlockSpec((F_IN, FP), lambda b: (0, 0)),
                pl.BlockSpec((1, FP), lambda b: (0, 0)),
                pl.BlockSpec((FP, F_OUT), lambda b: (0, 0)),
                pl.BlockSpec((1, F_OUT), lambda b: (0, 0)),
            ],
            out_specs=pl.BlockSpec((G, N, F_OUT), lambda b: (b, 0, 0)),
            compiler_params=pltpu.CompilerParams(
                dimension_semantics=("parallel",)),
        )(x.astype(jnp.float32), adj.astype(jnp.float32),
          w1_p, b1_p, w2_p, b2_p)

        return out[0] if single else out

    return forward


def generator_ft2_ref(x, adj, w1, b1, w2, b2):
    h = jax.nn.relu(adj @ (x @ w1) + b1)
    return jax.nn.sigmoid(adj @ (h @ w2) + b2)


if __name__ == "__main__":
    key = jax.random.PRNGKey(0)
    k_x, k_a, k_w1, k_b1, k_w2, k_b2 = jax.random.split(key, 6)

    N = 16   # nodes per graph
    B = 4    # small batch of graphs (exercises grid coarsening: 2 graphs/step)

    # deterministic parameter init (uniform(-stdv, stdv), stdv = 1/sqrt(out))
    stdv1 = 1.0 / np.sqrt(F_HID)
    stdv2 = 1.0 / np.sqrt(F_OUT)
    w1 = jax.random.uniform(k_w1, (F_IN, F_HID), jnp.float32, -stdv1, stdv1)
    b1 = jax.random.uniform(k_b1, (F_HID,), jnp.float32, -stdv1, stdv1)
    w2 = jax.random.uniform(k_w2, (F_HID, F_OUT), jnp.float32, -stdv2, stdv2)
    b2 = jax.random.uniform(k_b2, (F_OUT,), jnp.float32, -stdv2, stdv2)

    fwd = make_generator_ft2(w1, b1, w2, b2)

    # deterministic inputs: node features + symmetric row-normalized adjacency
    x = jax.random.normal(k_x, (B, N, F_IN), jnp.float32)
    a = (jax.random.uniform(k_a, (B, N, N)) > 0.7).astype(jnp.float32)
    a = jnp.maximum(a, jnp.swapaxes(a, -1, -2)) + jnp.eye(N, dtype=jnp.float32)
    adj = a / jnp.sum(a, axis=-1, keepdims=True)

    # batched call (grid=(2,), 2 graphs per "parallel" grid step)
    out_b = jax.block_until_ready(fwd(x, adj))
    ref_b = jax.vmap(lambda xx, aa: generator_ft2_ref(xx, aa, w1, b1, w2, b2))(x, adj)
    np.testing.assert_allclose(np.asarray(out_b), np.asarray(ref_b),
                               rtol=1e-5, atol=1e-5)

    # single-graph call (matches the original module's forward signature)
    out_1 = jax.block_until_ready(fwd(x[0], adj[0]))
    ref_1 = generator_ft2_ref(x[0], adj[0], w1, b1, w2, b2)
    np.testing.assert_allclose(np.asarray(out_1), np.asarray(ref_1),
                               rtol=1e-5, atol=1e-5)

    print("KERNEL_OK")
</pallas_src>

<mosaic_0001>
module attributes {stable_mosaic.version = 11 : i64} {
  func.func @_gcn2_kernel(%arg0: i32, %arg1: memref<2x16x2xf32, #tpu.memory_space<vmem>>, %arg2: memref<2x16x16xf32, #tpu.memory_space<vmem>>, %arg3: memref<2x128xf32, #tpu.memory_space<vmem>>, %arg4: memref<1x128xf32, #tpu.memory_space<vmem>>, %arg5: memref<128x2xf32, #tpu.memory_space<vmem>>, %arg6: memref<1x2xf32, #tpu.memory_space<vmem>>, %arg7: memref<2x16x2xf32, #tpu.memory_space<vmem>>) attributes {dimension_semantics = [#tpu.dimension_semantics<parallel>], iteration_bounds = array<i64: 2>, scalar_prefetch = 0 : i64, scratch_operands = 0 : i64, tpu.core_type = #tpu.core_type<tc>, window_params = [{transform_indices = @transform_0, window_bounds = array<i64: 2, 16, 2>}, {transform_indices = @transform_1, window_bounds = array<i64: 2, 16, 16>}, {pipeline_mode = #tpu.pipeline_mode<synchronous>, transform_indices = @transform_2, window_bounds = array<i64: 2, 128>}, {pipeline_mode = #tpu.pipeline_mode<synchronous>, transform_indices = @transform_3, window_bounds = array<i64: 1, 128>}, {pipeline_mode = #tpu.pipeline_mode<synchronous>, transform_indices = @transform_4, window_bounds = array<i64: 128, 2>}, {pipeline_mode = #tpu.pipeline_mode<synchronous>, transform_indices = @transform_5, window_bounds = array<i64: 1, 2>}, {transform_indices = @transform_6, window_bounds = array<i64: 2, 16, 2>}]} {
    %c0 = arith.constant 0 : index
    %c0_0 = arith.constant 0 : index
    %0 = vector.load %arg3[%c0, %c0_0] : memref<2x128xf32, #tpu.memory_space<vmem>>, vector<2x128xf32>
    %c0_1 = arith.constant 0 : index
    %c0_2 = arith.constant 0 : index
    %1 = vector.load %arg4[%c0_1, %c0_2] : memref<1x128xf32, #tpu.memory_space<vmem>>, vector<1x128xf32>
    %c0_3 = arith.constant 0 : index
    %c0_4 = arith.constant 0 : index
    %2 = vector.load %arg5[%c0_3, %c0_4] : memref<128x2xf32, #tpu.memory_space<vmem>>, vector<128x2xf32>
    %c0_5 = arith.constant 0 : index
    %c0_6 = arith.constant 0 : index
    %3 = vector.load %arg6[%c0_5, %c0_6] : memref<1x2xf32, #tpu.memory_space<vmem>>, vector<1x2xf32>
    %c0_7 = arith.constant 0 : index
    %c0_8 = arith.constant 0 : index
    %c0_9 = arith.constant 0 : index
    %4 = vector.load %arg1[%c0_7, %c0_8, %c0_9] : memref<2x16x2xf32, #tpu.memory_space<vmem>>, vector<1x16x2xf32>
    %5 = vector.shape_cast %4 : vector<1x16x2xf32> to vector<16x2xf32>
    %c0_10 = arith.constant 0 : index
    %c0_11 = arith.constant 0 : index
    %c0_12 = arith.constant 0 : index
    %6 = vector.load %arg2[%c0_10, %c0_11, %c0_12] : memref<2x16x16xf32, #tpu.memory_space<vmem>>, vector<1x16x16xf32>
    %7 = vector.shape_cast %6 : vector<1x16x16xf32> to vector<16x16xf32>
    %cst = arith.constant dense<0.000000e+00> : vector<16x128xf32>
    %8 = tpu.matmul %5, %0, %cst {dimension_numbers = #tpu.dot_dimension_numbers<[1], [0], [0], [1], [0, 0, 1, 1], [], []>} : vector<16x2xf32>, vector<2x128xf32>, vector<16x128xf32> -> vector<16x128xf32>
    %cst_13 = arith.constant dense<0.000000e+00> : vector<16x128xf32>
    %9 = tpu.matmul %7, %8, %cst_13 {dimension_numbers = #tpu.dot_dimension_numbers<[1], [0], [0], [1], [0, 0, 1, 1], [], []>} : vector<16x16xf32>, vector<16x128xf32>, vector<16x128xf32> -> vector<16x128xf32>
    %10 = vector.broadcast %1 : vector<1x128xf32> to vector<16x128xf32>
    %11 = arith.addf %9, %10 : vector<16x128xf32>
    %cst_14 = arith.constant 0.000000e+00 : f32
    %12 = vector.broadcast %cst_14 : f32 to vector<16x128xf32>
    %13 = arith.maximumf %11, %12 : vector<16x128xf32>
    %cst_15 = arith.constant dense<0.000000e+00> : vector<16x2xf32>
    %14 = tpu.matmul %13, %2, %cst_15 {dimension_numbers = #tpu.dot_dimension_numbers<[1], [0], [0], [1], [0, 0, 1, 1], [], []>} : vector<16x128xf32>, vector<128x2xf32>, vector<16x2xf32> -> vector<16x2xf32>
    %cst_16 = arith.constant dense<0.000000e+00> : vector<16x2xf32>
    %15 = tpu.matmul %7, %14, %cst_16 {dimension_numbers = #tpu.dot_dimension_numbers<[1], [0], [0], [1], [0, 0, 1, 1], [], []>} : vector<16x16xf32>, vector<16x2xf32>, vector<16x2xf32> -> vector<16x2xf32>
    %16 = vector.broadcast %3 : vector<1x2xf32> to vector<16x2xf32>
    %17 = arith.addf %15, %16 : vector<16x2xf32>
    %18 = arith.negf %17 : vector<16x2xf32>
    %19 = math.exp %18 : vector<16x2xf32>
    %cst_17 = arith.constant 1.000000e+00 : f32
    %20 = vector.broadcast %cst_17 : f32 to vector<16x2xf32>
    %21 = arith.addf %20, %19 : vector<16x2xf32>
    %22 = arith.divf %20, %21 : vector<16x2xf32>
    %c0_18 = arith.constant 0 : index
    %c0_19 = arith.constant 0 : index
    %c0_20 = arith.constant 0 : index
    %23 = vector.load %arg7[%c0_18, %c0_19, %c0_20] : memref<2x16x2xf32, #tpu.memory_space<vmem>>, vector<1x16x2xf32>
    %24 = vector.shape_cast %23 : vector<1x16x2xf32> to vector<16x2xf32>
    %25 = vector.shape_cast %22 : vector<16x2xf32> to vector<1x16x2xf32>
    tpu.vector_store %arg7[%c0_18, %c0_19, %c0_20], %25 {strides = array<i32>} : memref<2x16x2xf32, #tpu.memory_space<vmem>>, vector<1x16x2xf32>,
    %c1 = arith.constant 1 : index
    %c0_21 = arith.constant 0 : index
    %c0_22 = arith.constant 0 : index
    %26 = vector.load %arg1[%c1, %c0_21, %c0_22] : memref<2x16x2xf32, #tpu.memory_space<vmem>>, vector<1x16x2xf32>
    %27 = vector.shape_cast %26 : vector<1x16x2xf32> to vector<16x2xf32>
    %c1_23 = arith.constant 1 : index
    %c0_24 = arith.constant 0 : index
    %c0_25 = arith.constant 0 : index
    %28 = vector.load %arg2[%c1_23, %c0_24, %c0_25] : memref<2x16x16xf32, #tpu.memory_space<vmem>>, vector<1x16x16xf32>
    %29 = vector.shape_cast %28 : vector<1x16x16xf32> to vector<16x16xf32>
    %cst_26 = arith.constant dense<0.000000e+00> : vector<16x128xf32>
    %30 = tpu.matmul %27, %0, %cst_26 {dimension_numbers = #tpu.dot_dimension_numbers<[1], [0], [0], [1], [0, 0, 1, 1], [], []>} : vector<16x2xf32>, vector<2x128xf32>, vector<16x128xf32> -> vector<16x128xf32>
    %cst_27 = arith.constant dense<0.000000e+00> : vector<16x128xf32>
    %31 = tpu.matmul %29, %30, %cst_27 {dimension_numbers = #tpu.dot_dimension_numbers<[1], [0], [0], [1], [0, 0, 1, 1], [], []>} : vector<16x16xf32>, vector<16x128xf32>, vector<16x128xf32> -> vector<16x128xf32>
    %32 = vector.broadcast %1 : vector<1x128xf32> to vector<16x128xf32>
    %33 = arith.addf %31, %32 : vector<16x128xf32>
    %cst_28 = arith.constant 0.000000e+00 : f32
    %34 = vector.broadcast %cst_28 : f32 to vector<16x128xf32>
    %35 = arith.maximumf %33, %34 : vector<16x128xf32>
    %cst_29 = arith.constant dense<0.000000e+00> : vector<16x2xf32>
    %36 = tpu.matmul %35, %2, %cst_29 {dimension_numbers = #tpu.dot_dimension_numbers<[1], [0], [0], [1], [0, 0, 1, 1], [], []>} : vector<16x128xf32>, vector<128x2xf32>, vector<16x2xf32> -> vector<16x2xf32>
    %cst_30 = arith.constant dense<0.000000e+00> : vector<16x2xf32>
    %37 = tpu.matmul %29, %36, %cst_30 {dimension_numbers = #tpu.dot_dimension_numbers<[1], [0], [0], [1], [0, 0, 1, 1], [], []>} : vector<16x16xf32>, vector<16x2xf32>, vector<16x2xf32> -> vector<16x2xf32>
    %38 = vector.broadcast %3 : vector<1x2xf32> to vector<16x2xf32>
    %39 = arith.addf %37, %38 : vector<16x2xf32>
    %40 = arith.negf %39 : vector<16x2xf32>
    %41 = math.exp %40 : vector<16x2xf32>
    %cst_31 = arith.constant 1.000000e+00 : f32
    %42 = vector.broadcast %cst_31 : f32 to vector<16x2xf32>
    %43 = arith.addf %42, %41 : vector<16x2xf32>
    %44 = arith.divf %42, %43 : vector<16x2xf32>
    %c1_32 = arith.constant 1 : index
    %c0_33 = arith.constant 0 : index
    %c0_34 = arith.constant 0 : index
    %45 = vector.load %arg7[%c1_32, %c0_33, %c0_34] : memref<2x16x2xf32, #tpu.memory_space<vmem>>, vector<1x16x2xf32>
    %46 = vector.shape_cast %45 : vector<1x16x2xf32> to vector<16x2xf32>
    %47 = vector.shape_cast %44 : vector<16x2xf32> to vector<1x16x2xf32>
    tpu.vector_store %arg7[%c1_32, %c0_33, %c0_34], %47 {strides = array<i32>} : memref<2x16x2xf32, #tpu.memory_space<vmem>>, vector<1x16x2xf32>,
    return
  }
  func.func @transform_0(%arg0: i32) -> (i32, i32, i32) {
    %c0_i32 = arith.constant 0 : i32
    %c0_i32_0 = arith.constant 0 : i32
    %c0_i32_1 = arith.constant 0 : i32
    return %arg0, %c0_i32, %c0_i32_0 : i32, i32, i32
  }
  func.func @transform_1(%arg0: i32) -> (i32, i32, i32) {
    %c0_i32 = arith.constant 0 : i32
    %c0_i32_0 = arith.constant 0 : i32
    %c0_i32_1 = arith.constant 0 : i32
    return %arg0, %c0_i32, %c0_i32_0 : i32, i32, i32
  }
  func.func @transform_2(%arg0: i32) -> (i32, i32) {
    %c0_i32 = arith.constant 0 : i32
    %c0_i32_0 = arith.constant 0 : i32
    %c0_i32_1 = arith.constant 0 : i32
    return %c0_i32, %c0_i32_0 : i32, i32
  }
  func.func @transform_3(%arg0: i32) -> (i32, i32) {
    %c0_i32 = arith.constant 0 : i32
    %c0_i32_0 = arith.constant 0 : i32
    %c0_i32_1 = arith.constant 0 : i32
    return %c0_i32, %c0_i32_0 : i32, i32
  }
  func.func @transform_4(%arg0: i32) -> (i32, i32) {
    %c0_i32 = arith.constant 0 : i32
    %c0_i32_0 = arith.constant 0 : i32
    %c0_i32_1 = arith.constant 0 : i32
    return %c0_i32, %c0_i32_0 : i32, i32
  }
  func.func @transform_5(%arg0: i32) -> (i32, i32) {
    %c0_i32 = arith.constant 0 : i32
    %c0_i32_0 = arith.constant 0 : i32
    %c0_i32_1 = arith.constant 0 : i32
    return %c0_i32, %c0_i32_0 : i32, i32
  }
  func.func @transform_6(%arg0: i32) -> (i32, i32, i32) {
    %c0_i32 = arith.constant 0 : i32
    %c0_i32_0 = arith.constant 0 : i32
    %c0_i32_1 = arith.constant 0 : i32
    return %arg0, %c0_i32, %c0_i32_0 : i32, i32, i32
  }
}

</mosaic_0001>

<llo_original>
// kernel: forward.1
$region0: #{forward.1}
  #allocation0 [shape = 'u32[]', space=smem, size = 0x4, offset = 0x4, fixed_abs, tag = 'smem constant byte address 0x4 - core index']
  #allocation1 [shape = 'u32[144,128]{1,0:T(1,128)}', space=vmem, size = 0x12000, scoped, tag = 'internal scratch']
  %s0 = inlined_call_operand.vmem [shape: f32[4,16,2], index: 0, kind: input, shape index: {}]
  %s1 = inlined_call_operand.vmem [shape: f32[4,16,16], index: 1, kind: input, shape index: {}]
  %s2 = inlined_call_operand.vmem [shape: f32[2,128], index: 2, kind: input, shape index: {}]
  %s3 = inlined_call_operand.vmem [shape: f32[1,128], index: 3, kind: input, shape index: {}]
  %s4 = inlined_call_operand.hbm [shape: f32[128,2], index: 4, kind: input, shape index: {}]
  %s5 = inlined_call_operand.vmem [shape: f32[1,2], index: 5, kind: input, shape index: {}]
  %s6 = inlined_call_operand.vmem [shape: f32[4,16,2], index: 6, kind: output, shape index: {}]
  %s7 = sld [smem:[#allocation0]]
  $region61: #{forward.1} parent=0
    _
  %s9 = ssub.s32 1, %s7
  %s10 = scalar_select 0, %s9, %s7
  $region1: #{forward.1} parent=0
    #allocation2 [shape = 'u8[65536]{0}', space=vmem, size = 0x10000, scoped, tag = 'input window, operand 4, single buffered']
    #allocation3 [shape = 's32[2]{0}', space=sflag, size = 0x8, scoped, tag = 'scoped memory for forward.1']
    %11 = vsyncpa [#allocation3], 0
    loop: start=0, step=1, limit=4
    $region2: #{forward.1} parent=1 // loop_pre_header
      _
    $region3: #{forward.1} parent=1 // loop_header
      %s13 = sphi 0, %s17
      %p14 = scmp.ge.s32.totalorder %s13, 4
      %s23 = sphi 0, %s25
      %s26 = sphi 0, %s23
      %s27 = sphi 0, %s26
      %s43 = sphi 0, %s27
      %s49 = sphi 0, %s51
      %s52 = sphi 0, %s49
      %s53 = sphi 0, %s52
      %s69 = sphi 0, %s53
      %s73 = sphi 0, %s73
      %s75 = sphi 0, %s73
      %s76 = sphi 0, %s75
      %s90 = sphi 0, %s76
      %s94 = sphi 0, %s94
      %s96 = sphi 0, %s94
      %s97 = sphi 0, %s96
      %s111 = sphi 0, %s97
      %s115 = sphi 0, %s115
      %s117 = sphi 0, %s115
      %s118 = sphi 0, %s117
      %s132 = sphi 0, %s118
      %s136 = sphi 0, %s136
      %s138 = sphi 0, %s136
      %s139 = sphi 0, %s138
      %s153 = sphi 0, %s139
      %s159 = sphi 0, %s161
      %s162 = sphi 0, %s159
      %s163 = sphi 0, %s162
      %s179 = sphi 0, %s163
    $region4: #{forward.1} parent=1 // loop_header_branch
      %16 = sbr.rel (%p14) target = $region8
    $region5: #{forward.1} parent=1 // loop_body
      %s18 = ssub.s32 %s13, 1
      %s19 = ssub.s32 %s13, 2
      %s20 = sadd.s32 %s13, 1
      %s21 = ssub.s32 %s13, %s20
      %p22 = scmp.eq.s32.totalorder %s21, 0
      %s24 = sadd.s32 %s23, 1
      %s25 = scalar_select %p22, %s23, %s24
      %p28 = pneg %p22
      %p29 = scmp.eq.s32.totalorder %s13, 1
      %p30 = por %p28, %p29
      %p31 = scmp.ne.s32.totalorder %s23, %s26
      %p32 = scmp.eq.s32.totalorder %s13, 0
      %p33 = por %p31, %p32
      %p34 = scmp.ne.s32.totalorder %s23, %s26
      %p35 = scmp.eq.s32.totalorder %s18, 1
      %p36 = por %p34, %p35
      %p37 = scmp.ne.s32.totalorder %s26, %s27
      %p38 = scmp.eq.s32.totalorder %s18, 0
      %p39 = por %p37, %p38
      %p40 = scmp.ne.s32.totalorder %s26, %s27
      %p41 = scmp.eq.s32.totalorder %s19, 1
      %p42 = por %p40, %p41
      %p44 = scmp.ne.s32.totalorder %s27, %s43
      %p45 = scmp.eq.s32.totalorder %s19, 0
      %p46 = por %p44, %p45
      %s47 = ssub.s32 %s13, %s20
      %p48 = scmp.eq.s32.totalorder %s47, 0
      %s50 = sadd.s32 %s49, 1
      %s51 = scalar_select %p48, %s49, %s50
      %p54 = pneg %p48
      %p55 = scmp.eq.s32.totalorder %s13, 1
      %p56 = por %p54, %p55
      %p57 = scmp.ne.s32.totalorder %s49, %s52
      %p58 = scmp.eq.s32.totalorder %s13, 0
      %p59 = por %p57, %p58
      %p60 = scmp.ne.s32.totalorder %s49, %s52
      %p61 = scmp.eq.s32.totalorder %s18, 1
      %p62 = por %p60, %p61
      %p63 = scmp.ne.s32.totalorder %s52, %s53
      %p64 = scmp.eq.s32.totalorder %s18, 0
      %p65 = por %p63, %p64
      %p66 = scmp.ne.s32.totalorder %s52, %s53
      %p67 = scmp.eq.s32.totalorder %s19, 1
      %p68 = por %p66, %p67
      %p70 = scmp.ne.s32.totalorder %s53, %s69
      %p71 = scmp.eq.s32.totalorder %s19, 0
      %p72 = por %p70, %p71
      %s74 = sadd.s32 %s73, 1
      %p77 = scmp.eq.s32.totalorder %s13, 1
      %p78 = scmp.ne.s32.totalorder %s73, %s75
      %p79 = scmp.eq.s32.totalorder %s13, 0
      %p80 = por %p78, %p79
      %p81 = scmp.ne.s32.totalorder %s73, %s75
      %p82 = scmp.eq.s32.totalorder %s18, 1
      %p83 = por %p81, %p82
      %p84 = scmp.ne.s32.totalorder %s75, %s76
      %p85 = scmp.eq.s32.totalorder %s18, 0
      %p86 = por %p84, %p85
      %p87 = scmp.ne.s32.totalorder %s75, %s76
      %p88 = scmp.eq.s32.totalorder %s19, 1
      %p89 = por %p87, %p88
      %p91 = scmp.ne.s32.totalorder %s76, %s90
      %p92 = scmp.eq.s32.totalorder %s19, 0
      %p93 = por %p91, %p92
      %s95 = sadd.s32 %s94, 1
      %p98 = scmp.eq.s32.totalorder %s13, 1
      %p99 = scmp.ne.s32.totalorder %s94, %s96
      %p100 = scmp.eq.s32.totalorder %s13, 0
      %p101 = por %p99, %p100
      %p102 = scmp.ne.s32.totalorder %s94, %s96
      %p103 = scmp.eq.s32.totalorder %s18, 1
      %p104 = por %p102, %p103
      %p105 = scmp.ne.s32.totalorder %s96, %s97
      %p106 = scmp.eq.s32.totalorder %s18, 0
      %p107 = por %p105, %p106
      %p108 = scmp.ne.s32.totalorder %s96, %s97
      %p109 = scmp.eq.s32.totalorder %s19, 1
      %p110 = por %p108, %p109
      %p112 = scmp.ne.s32.totalorder %s97, %s111
      %p113 = scmp.eq.s32.totalorder %s19, 0
      %p114 = por %p112, %p113
      %s116 = sadd.s32 %s115, 1
      %p119 = scmp.eq.s32.totalorder %s13, 1
      %p120 = scmp.ne.s32.totalorder %s115, %s117
      %p121 = scmp.eq.s32.totalorder %s13, 0
      %p122 = por %p120, %p121
      %p123 = scmp.ne.s32.totalorder %s115, %s117
      %p124 = scmp.eq.s32.totalorder %s18, 1
      %p125 = por %p123, %p124
      %p126 = scmp.ne.s32.totalorder %s117, %s118
      %p127 = scmp.eq.s32.totalorder %s18, 0
      %p128 = por %p126, %p127
      %p129 = scmp.ne.s32.totalorder %s117, %s118
      %p130 = scmp.eq.s32.totalorder %s19, 1
      %p131 = por %p129, %p130
      %p133 = scmp.ne.s32.totalorder %s118, %s132
      %p134 = scmp.eq.s32.totalorder %s19, 0
      %p135 = por %p133, %p134
      %s137 = sadd.s32 %s136, 1
      %p140 = scmp.eq.s32.totalorder %s13, 1
      %p141 = scmp.ne.s32.totalorder %s136, %s138
      %p142 = scmp.eq.s32.totalorder %s13, 0
      %p143 = por %p141, %p142
      %p144 = scmp.ne.s32.totalorder %s136, %s138
      %p145 = scmp.eq.s32.totalorder %s18, 1
      %p146 = por %p144, %p145
      %p147 = scmp.ne.s32.totalorder %s138, %s139
      %p148 = scmp.eq.s32.totalorder %s18, 0
      %p149 = por %p147, %p148
      %p150 = scmp.ne.s32.totalorder %s138, %s139
      %p151 = scmp.eq.s32.totalorder %s19, 1
      %p152 = por %p150, %p151
      %p154 = scmp.ne.s32.totalorder %s139, %s153
      %p155 = scmp.eq.s32.totalorder %s19, 0
      %p156 = por %p154, %p155
      %s157 = ssub.s32 %s13, %s20
      %p158 = scmp.eq.s32.totalorder %s157, 0
      %s160 = sadd.s32 %s159, 1
      %s161 = scalar_select %p158, %s159, %s160
      %p164 = pneg %p158
      %p165 = scmp.eq.s32.totalorder %s13, 1
      %p166 = por %p164, %p165
      %p167 = scmp.ne.s32.totalorder %s159, %s162
      %p168 = scmp.eq.s32.totalorder %s13, 0
      %p169 = por %p167, %p168
      %p170 = scmp.ne.s32.totalorder %s159, %s162
      %p171 = scmp.eq.s32.totalorder %s18, 1
      %p172 = por %p170, %p171
      %p173 = scmp.ne.s32.totalorder %s162, %s163
      %p174 = scmp.eq.s32.totalorder %s18, 0
      %p175 = por %p173, %p174
      %p176 = scmp.ne.s32.totalorder %s162, %s163
      %p177 = scmp.eq.s32.totalorder %s19, 1
      %p178 = por %p176, %p177
      %p180 = scmp.ne.s32.totalorder %s163, %s179
      %p181 = scmp.eq.s32.totalorder %s19, 0
      %p182 = por %p180, %p181
      %p183 = scmp.le.s32.totalorder 1, %s13
      %p184 = scmp.lt.s32.totalorder %s13, 3
      %p185 = pnand %p183, %p184
      %p186 = pneg %p185
      // Predicated region
      $region9: #{forward.1} parent=5 // pred_check
        _
      $region10: #{forward.1} parent=5 // pred_check_branch
        %188 = sbr.rel (%p185) target = $region12
      $region11: #{forward.1} parent=5 // pred_region
        %s189 = ssub.s32 %s13, 1
        // Predicated region
        $region13: #{forward.1} parent=11 // pred_check
          %p190 = pneg %p86
        $region14: #{forward.1} parent=11 // pred_check_branch
          %192 = sbr.rel (%p190) target = $region16
        $region15: #{forward.1} parent=11 // pred_region
          _
        $region16: #{forward.1} parent=11 // pred_fallthru
          _
        // Predicated region
        $region17: #{forward.1} parent=11 // pred_check
          %p193 = pneg %p107
        $region18: #{forward.1} parent=11 // pred_check_branch
          %195 = sbr.rel (%p193) target = $region20
        $region19: #{forward.1} parent=11 // pred_region
          _
        $region20: #{forward.1} parent=11 // pred_fallthru
          _
        // Predicated region
        $region21: #{forward.1} parent=11 // pred_check
          %p196 = pneg %p128
        $region22: #{forward.1} parent=11 // pred_check_branch
          %198 = sbr.rel (%p196) target = $region24
        $region23: #{forward.1} parent=11 // pred_region
          %s200 = ssub.s32 2048, 2048
          %201 = vsyncadd [#allocation3], %s200
          %s202 = sshll.u32 [#allocation2], 4
          %s203 = int_to_ptr.vmem [resolvable:$true] %s202
          %208 = dma.hbm_to_vmem [thread:$0]  %s4, 2048, %s203, [#allocation3], 128, 128, 8
        $region24: #{forward.1} parent=11 // pred_fallthru
          _
        // Predicated region
        $region25: #{forward.1} parent=11 // pred_check
          %p209 = pneg %p149
        $region26: #{forward.1} parent=11 // pred_check_branch
          %211 = sbr.rel (%p209) target = $region28
        $region27: #{forward.1} parent=11 // pred_region
          _
        $region28: #{forward.1} parent=11 // pred_fallthru
          _
      $region12: #{forward.1} parent=5 // pred_fallthru
        _
      %p212 = scmp.lt.s32.totalorder %s13, 2
      // Predicated region
      $region29: #{forward.1} parent=5 // pred_check
        %p213 = pneg %p212
      $region30: #{forward.1} parent=5 // pred_check_branch
        %215 = sbr.rel (%p213) target = $region32
      $region31: #{forward.1} parent=5 // pred_region
        // Predicated region
        $region33: #{forward.1} parent=31 // pred_check
          %p216 = pneg %p33
        $region34: #{forward.1} parent=31 // pred_check_branch
          %218 = sbr.rel (%p216) target = $region36
        $region35: #{forward.1} parent=31 // pred_region
          %s219 = smul.u32 2, %s13
          %p220 = scmp.lt.s32.totalorder %s219, 3
          %s221 = scalar_select %p220, %s219, 3
          %s222 = smul.addr %s221, 2
          %s223 = smul.addr %s222, 8
          %s224 = scalar_lea.vmem %s0, %s223
          %s225 = smul.u32 2, %s13
        $region36: #{forward.1} parent=31 // pred_fallthru
          _
        // Predicated region
        $region37: #{forward.1} parent=31 // pred_check
          %p226 = pneg %p59
        $region38: #{forward.1} parent=31 // pred_check_branch
          %228 = sbr.rel (%p226) target = $region40
        $region39: #{forward.1} parent=31 // pred_region
          %s229 = smul.u32 2, %s13
          %p230 = scmp.lt.s32.totalorder %s229, 3
          %s231 = scalar_select %p230, %s229, 3
          %s232 = smul.addr %s231, 2
          %s233 = smul.addr %s232, 8
          %s234 = scalar_lea.vmem %s1, %s233
          %s235 = smul.u32 2, %s13
        $region40: #{forward.1} parent=31 // pred_fallthru
          _
      $region32: #{forward.1} parent=5 // pred_fallthru
        _
      %p236 = scmp.le.s32.totalorder 1, %s13
      %p237 = scmp.lt.s32.totalorder %s13, 3
      %p238 = pnand %p236, %p237
      %p239 = pneg %p238
      // Predicated region
      $region41: #{forward.1} parent=5 // pred_check
        _
      $region42: #{forward.1} parent=5 // pred_check_branch
        %241 = sbr.rel (%p238) target = $region44
      $region43: #{forward.1} parent=5 // pred_region
        %s242 = ssub.s32 %s13, 1
        // Predicated region
        $region45: #{forward.1} parent=43 // pred_check
          %p243 = pneg %p128
        $region46: #{forward.1} parent=43 // pred_check_branch
          %245 = sbr.rel (%p243) target = $region48
        $region47: #{forward.1} parent=43 // pred_region
          %246 = dma.done [#allocation3], 2048
        $region48: #{forward.1} parent=43 // pred_fallthru
          _
        %s247 = smul.u32 2, %s18
        %p248 = scmp.lt.s32.totalorder %s247, 3
        %s249 = scalar_select %p248, %s247, 3
        %s250 = smul.addr %s249, 2
        %s251 = smul.addr %s250, 8
        %s252 = scalar_lea.vmem %s0, %s251
        %p253 = pneg %p39
        %p254 = pneg %p36
        %s255 = smul.u32 2, %s18
        %p256 = scmp.lt.s32.totalorder %s255, 3
        %s257 = scalar_select %p256, %s255, 3
        %s258 = smul.addr %s257, 2
        %s259 = smul.addr %s258, 8
        %s260 = scalar_lea.vmem %s1, %s259
        %p261 = pneg %p65
        %p262 = pneg %p62
        %p263 = pneg %p86
        %p264 = pneg %p83
        %p265 = pneg %p107
        %p266 = pneg %p104
        %p267 = pneg %p128
        %p268 = pneg %p125
        %p269 = pneg %p149
        %p270 = pneg %p146
        %p271 = pneg %p175
        %p272 = pneg %p172
        %s273 = smul.u32 2, %s18
        %p274 = scmp.lt.s32.totalorder %s273, 3
        %s275 = scalar_select %p274, %s273, 3
        %s276 = smul.addr %s275, 2
        %s277 = smul.addr %s276, 8
        %s278 = scalar_lea.vmem %s6, %s277
        %s279 = smul.u32 2, %s18
        %p280 = scmp.lt.s32.totalorder %s279, 3
        %s281 = scalar_select %p280, %s279, 3
        %s282 = smul.addr %s281, 2
        %s283 = smul.addr %s282, 8
        %s284 = scalar_lea.vmem %s0, %s283
        %s285 = smul.u32 2, %s18
        %s286 = smul.u32 2, %s18
        %p287 = scmp.lt.s32.totalorder %s286, 3
        %s288 = scalar_select %p287, %s286, 3
        %s289 = smul.addr %s288, 2
        %s290 = smul.addr %s289, 8
        %s291 = scalar_lea.vmem %s1, %s290
        %s292 = smul.u32 2, %s18
        %s293 = smul.u32 2, %s18
        %p294 = scmp.lt.s32.totalorder %s293, 3
        %s295 = scalar_select %p294, %s293, 3
        %s296 = smul.addr %s295, 2
        %s297 = smul.addr %s296, 8
        %s298 = scalar_lea.vmem %s6, %s297
        %s299 = smul.u32 2, %s18
        %v300 = vld [vmem:[%s2] sm:$0x3]
        %v301 = vld [vmem:[%s3] sm:$0x1]
        %v302 = vld [vmem:[#allocation2] sm:$0xff]
        %v303 = vld [vmem:[#allocation2 + $0x8] sm:$0xff]
        %v304 = vld [vmem:[#allocation2 + $0x10] sm:$0xff]
        %v305 = vld [vmem:[#allocation2 + $0x18] sm:$0xff]
        %v306 = vld [vmem:[#allocation2 + $0x20] sm:$0xff]
        %v307 = vld [vmem:[#allocation2 + $0x28] sm:$0xff]
        %v308 = vld [vmem:[#allocation2 + $0x30] sm:$0xff]
        %v309 = vld [vmem:[#allocation2 + $0x38] sm:$0xff]
        %v310 = vld [vmem:[#allocation2 + $0x40] sm:$0xff]
        %v311 = vld [vmem:[#allocation2 + $0x48] sm:$0xff]
        %v312 = vld [vmem:[#allocation2 + $0x50] sm:$0xff]
        %v313 = vld [vmem:[#allocation2 + $0x58] sm:$0xff]
        %v314 = vld [vmem:[#allocation2 + $0x60] sm:$0xff]
        %v315 = vld [vmem:[#allocation2 + $0x68] sm:$0xff]
        %v316 = vld [vmem:[#allocation2 + $0x70] sm:$0xff]
        %v317 = vld [vmem:[#allocation2 + $0x78] sm:$0xff]
        %v318 = vld [vmem:[%s5] sm:$0x1]
        %v319 = vld [vmem:[%s284] sm:$0xff]
        %v320 = vld [vmem:[%s284 + $0x8] sm:$0xff]
        %v321 = vld [vmem:[%s291] sm:$0xff]
        %v322 = vld [vmem:[%s291 + $0x8] sm:$0xff]
        %vm323 = vcmask 15360
        %v325 = vsel %vm323, %v319, 0
        %v328 = vsel %vm323, %v320, 0
        %vm330 = vcmask 1041408
        %v332 = vsel %vm330, %v300, 0
        %334 = vmatprep.subr.mxu0 0.0
        %335 = vmatpush1.msra.mxu0 %v332
        %336 = vmatprep.subr.mxu0 0.0
        %337 = vmatpush1.msra.mxu0 0.0
        %338 = vmatprep.subr.mxu0 0.0
        %339 = vmatpush1.msra.mxu0 0.0
        %340 = vmatprep.subr.mxu0 0.0
        %341 = vmatpush1.msra.mxu0 0.0
        %342 = vmatprep.subr.mxu0 0.0
        %343 = vmatpush1.msra.mxu0 0.0
        %344 = vmatprep.subr.mxu0 0.0
        %345 = vmatpush1.msra.mxu0 0.0
        %346 = vmatprep.subr.mxu0 0.0
        %347 = vmatpush1.msra.mxu0 0.0
        %348 = vmatprep.subr.mxu0 0.0
        %349 = vmatpush1.msra.mxu0 0.0
        %350 = vmatprep.subr.mxu0 0.0
        %351 = vmatpush1.msra.mxu0 0.0
        %352 = vmatprep.subr.mxu0 0.0
        %353 = vmatpush1.msra.mxu0 0.0
        %354 = vmatprep.subr.mxu0 0.0
        %355 = vmatpush1.msra.mxu0 0.0
        %356 = vmatprep.subr.mxu0 0.0
        %357 = vmatpush1.msra.mxu0 0.0
        %358 = vmatprep.subr.mxu0 0.0
        %359 = vmatpush1.msra.mxu0 0.0
        %360 = vmatprep.subr.mxu0 0.0
        %361 = vmatpush1.msra.mxu0 0.0
        %362 = vmatprep.subr.mxu0 0.0
        %363 = vmatpush1.msra.mxu0 0.0
        %364 = vmatprep.subr.mxu0 0.0
        %365 = vmatpush1.msra.mxu0 0.0
        %366 = vmatprep.subr.mxu0 0.0
        %367 = vmatpush1.msra.mxu0 0.0
        %368 = vmatprep.subr.mxu0 0.0
        %369 = vmatpush1.msra.mxu0 0.0
        %370 = vmatprep.subr.mxu0 0.0
        %371 = vmatpush1.msra.mxu0 0.0
        %372 = vmatprep.subr.mxu0 0.0
        %373 = vmatpush1.msra.mxu0 0.0
        %374 = vmatprep.subr.mxu0 0.0
        %375 = vmatpush1.msra.mxu0 0.0
        %376 = vmatprep.subr.mxu0 0.0
        %377 = vmatpush1.msra.mxu0 0.0
        %378 = vmatprep.subr.mxu0 0.0
        %379 = vmatpush1.msra.mxu0 0.0
        %380 = vmatprep.subr.mxu0 0.0
        %381 = vmatpush1.msra.mxu0 0.0
        %382 = vmatprep.subr.mxu0 0.0
        %383 = vmatpush1.msra.mxu0 0.0
        %384 = vmatprep.subr.mxu0 0.0
        %385 = vmatpush1.msra.mxu0 0.0
        %386 = vmatprep.subr.mxu0 0.0
        %387 = vmatpush1.msra.mxu0 0.0
        %388 = vmatprep.subr.mxu0 0.0
        %389 = vmatpush1.msra.mxu0 0.0
        %390 = vmatprep.subr.mxu0 0.0
        %391 = vmatpush1.msra.mxu0 0.0
        %392 = vmatprep.subr.mxu0 0.0
        %393 = vmatpush1.msra.mxu0 0.0
        %394 = vmatprep.subr.mxu0 0.0
        %395 = vmatpush1.msra.mxu0 0.0
        %396 = vmatprep.subr.mxu0 0.0
        %397 = vmatpush1.msra.mxu0 0.0
        %398 = vmatprep.mubr.f32.mxu0 0.0
        %399 = vmatmul.mubr.f32.gmra.mrb[0].mxu0 %v325
        %v400 = vpop.f32.mrb[0].mxu0
        %v401 = vadd.f32 0.0, %v400
        %v402 = vpop.f32.mrb[0].mxu0
        %403 = vmatprep.mubr.f32.mxu0 0.0
        %404 = vmatmul.mubr.f32.gmra.mrb[0].mxu0 %v328
        %v405 = vpop.f32.mrb[0].mxu0
        %v406 = vadd.f32 0.0, %v405
        %v407 = vpop.f32.mrb[0].mxu0
        %408 = vdwg.mxu0
        %v410 = vlaneseq
        %v411 = vshrl.u32 %v410, 7
        %v412 = vsub.s32 0, %v411
        %v413 = vrot.slane %v301, %v412
        %vm415 = vcmask 130048
        %v417 = vsel %vm415, %v321, 0
        %v420 = vsel %vm415, %v322, 0
        %422 = vmatprep.subr.mxu0 0.0
        %423 = vmatpush1.msra.mxu0 %v401
        %424 = vmatprep.subr.mxu0 0.0
        %425 = vmatpush1.msra.mxu0 %v406
        %426 = vmatprep.subr.mxu0 0.0
        %427 = vmatpush1.msra.mxu0 0.0
        %428 = vmatprep.subr.mxu0 0.0
        %429 = vmatpush1.msra.mxu0 0.0
        %430 = vmatprep.subr.mxu0 0.0
        %431 = vmatpush1.msra.mxu0 0.0
        %432 = vmatprep.subr.mxu0 0.0
        %433 = vmatpush1.msra.mxu0 0.0
        %434 = vmatprep.subr.mxu0 0.0
        %435 = vmatpush1.msra.mxu0 0.0
        %436 = vmatprep.subr.mxu0 0.0
        %437 = vmatpush1.msra.mxu0 0.0
        %438 = vmatprep.subr.mxu0 0.0
        %439 = vmatpush1.msra.mxu0 0.0
        %440 = vmatprep.subr.mxu0 0.0
        %441 = vmatpush1.msra.mxu0 0.0
        %442 = vmatprep.subr.mxu0 0.0
        %443 = vmatpush1.msra.mxu0 0.0
        %444 = vmatprep.subr.mxu0 0.0
        %445 = vmatpush1.msra.mxu0 0.0
        %446 = vmatprep.subr.mxu0 0.0
        %447 = vmatpush1.msra.mxu0 0.0
        %448 = vmatprep.subr.mxu0 0.0
        %449 = vmatpush1.msra.mxu0 0.0
        %450 = vmatprep.subr.mxu0 0.0
        %451 = vmatpush1.msra.mxu0 0.0
        %452 = vmatprep.subr.mxu0 0.0
        %453 = vmatpush1.msra.mxu0 0.0
        %454 = vmatprep.subr.mxu0 0.0
        %455 = vmatpush1.msra.mxu0 0.0
        %456 = vmatprep.subr.mxu0 0.0
        %457 = vmatpush1.msra.mxu0 0.0
        %458 = vmatprep.subr.mxu0 0.0
        %459 = vmatpush1.msra.mxu0 0.0
        %460 = vmatprep.subr.mxu0 0.0
        %461 = vmatpush1.msra.mxu0 0.0
        %462 = vmatprep.subr.mxu0 0.0
        %463 = vmatpush1.msra.mxu0 0.0
        %464 = vmatprep.subr.mxu0 0.0
        %465 = vmatpush1.msra.mxu0 0.0
        %466 = vmatprep.subr.mxu0 0.0
        %467 = vmatpush1.msra.mxu0 0.0
        %468 = vmatprep.subr.mxu0 0.0
        %469 = vmatpush1.msra.mxu0 0.0
        %470 = vmatprep.subr.mxu0 0.0
        %471 = vmatpush1.msra.mxu0 0.0
        %472 = vmatprep.subr.mxu0 0.0
        %473 = vmatpush1.msra.mxu0 0.0
        %474 = vmatprep.subr.mxu0 0.0
        %475 = vmatpush1.msra.mxu0 0.0
        %476 = vmatprep.subr.mxu0 0.0
        %477 = vmatpush1.msra.mxu0 0.0
        %478 = vmatprep.subr.mxu0 0.0
        %479 = vmatpush1.msra.mxu0 0.0
        %480 = vmatprep.subr.mxu0 0.0
        %481 = vmatpush1.msra.mxu0 0.0
        %482 = vmatprep.subr.mxu0 0.0
        %483 = vmatpush1.msra.mxu0 0.0
        %484 = vmatprep.subr.mxu0 0.0
        %485 = vmatpush1.msra.mxu0 0.0
        %486 = vmatprep.mubr.f32.mxu0 0.0
        %487 = vmatmul.mubr.f32.gmra.mrb[0].mxu0 %v417
        %v488 = vpop.f32.mrb[0].mxu0
        %v489 = vadd.f32 %v413, %v488
        %v490 = vpop.f32.mrb[0].mxu0
        %491 = vmatprep.mubr.f32.mxu0 0.0
        %492 = vmatmul.mubr.f32.gmra.mrb[0].mxu0 %v420
        %v493 = vpop.f32.mrb[0].mxu0
        %v494 = vadd.f32 %v413, %v493
        %v495 = vpop.f32.mrb[0].mxu0
        %496 = vdwg.mxu0
        %v497 = vmax.f32 %v489, 0.0
        %v498 = vmax.f32 %v494, 0.0
        %499 = vmatprep.subr.mxu0 0.0
        %500 = vmatpush1.msra.mxu0 %v302
        %501 = vmatprep.subr.mxu0 0.0
        %502 = vmatpush1.msra.mxu0 %v303
        %503 = vmatprep.subr.mxu0 0.0
        %504 = vmatpush1.msra.mxu0 %v304
        %505 = vmatprep.subr.mxu0 0.0
        %506 = vmatpush1.msra.mxu0 %v305
        %507 = vmatprep.subr.mxu0 0.0
        %508 = vmatpush1.msra.mxu0 %v306
        %509 = vmatprep.subr.mxu0 0.0
        %510 = vmatpush1.msra.mxu0 %v307
        %511 = vmatprep.subr.mxu0 0.0
        %512 = vmatpush1.msra.mxu0 %v308
        %513 = vmatprep.subr.mxu0 0.0
        %514 = vmatpush1.msra.mxu0 %v309
        %515 = vmatprep.subr.mxu0 0.0
        %516 = vmatpush1.msra.mxu0 %v310
        %517 = vmatprep.subr.mxu0 0.0
        %518 = vmatpush1.msra.mxu0 %v311
        %519 = vmatprep.subr.mxu0 0.0
        %520 = vmatpush1.msra.mxu0 %v312
        %521 = vmatprep.subr.mxu0 0.0
        %522 = vmatpush1.msra.mxu0 %v313
        %523 = vmatprep.subr.mxu0 0.0
        %524 = vmatpush1.msra.mxu0 %v314
        %525 = vmatprep.subr.mxu0 0.0
        %526 = vmatpush1.msra.mxu0 %v315
        %527 = vmatprep.subr.mxu0 0.0
        %528 = vmatpush1.msra.mxu0 %v316
        %529 = vmatprep.subr.mxu0 0.0
        %530 = vmatpush1.msra.mxu0 %v317
        %531 = vmatprep.subr.mxu0 0.0
        %532 = vmatpush1.msra.mxu0 0.0
        %533 = vmatprep.subr.mxu0 0.0
        %534 = vmatpush1.msra.mxu0 0.0
        %535 = vmatprep.subr.mxu0 0.0
        %536 = vmatpush1.msra.mxu0 0.0
        %537 = vmatprep.subr.mxu0 0.0
        %538 = vmatpush1.msra.mxu0 0.0
        %539 = vmatprep.subr.mxu0 0.0
        %540 = vmatpush1.msra.mxu0 0.0
        %541 = vmatprep.subr.mxu0 0.0
        %542 = vmatpush1.msra.mxu0 0.0
        %543 = vmatprep.subr.mxu0 0.0
        %544 = vmatpush1.msra.mxu0 0.0
        %545 = vmatprep.subr.mxu0 0.0
        %546 = vmatpush1.msra.mxu0 0.0
        %547 = vmatprep.subr.mxu0 0.0
        %548 = vmatpush1.msra.mxu0 0.0
        %549 = vmatprep.subr.mxu0 0.0
        %550 = vmatpush1.msra.mxu0 0.0
        %551 = vmatprep.subr.mxu0 0.0
        %552 = vmatpush1.msra.mxu0 0.0
        %553 = vmatprep.subr.mxu0 0.0
        %554 = vmatpush1.msra.mxu0 0.0
        %555 = vmatprep.subr.mxu0 0.0
        %556 = vmatpush1.msra.mxu0 0.0
        %557 = vmatprep.subr.mxu0 0.0
        %558 = vmatpush1.msra.mxu0 0.0
        %559 = vmatprep.subr.mxu0 0.0
        %560 = vmatpush1.msra.mxu0 0.0
        %561 = vmatprep.subr.mxu0 0.0
        %562 = vmatpush1.msra.mxu0 0.0
        %563 = vmatprep.mubr.f32.mxu0 0.0
        %564 = vmatmul.mubr.f32.gmra.mrb[0].mxu0 %v497
        %v565 = vpop.f32.mrb[0].mxu0
        %v566 = vadd.f32 0.0, %v565
        %v567 = vpop.f32.mrb[0].mxu0
        %568 = vmatprep.mubr.f32.mxu0 0.0
        %569 = vmatmul.mubr.f32.gmra.mrb[0].mxu0 %v498
        %v570 = vpop.f32.mrb[0].mxu0
        %v571 = vadd.f32 0.0, %v570
        %v572 = vpop.f32.mrb[0].mxu0
        %573 = vdwg.mxu0
        %v575 = vlaneseq
        %v576 = vshrl.u32 %v575, 7
        %v577 = vsub.s32 0, %v576
        %v578 = vrot.slane %v318, %v577
        %580 = vmatprep.subr.mxu0 0.0
        %581 = vmatpush1.msra.mxu0 %v566
        %582 = vmatprep.subr.mxu0 0.0
        %583 = vmatpush1.msra.mxu0 %v571
        %584 = vmatprep.subr.mxu0 0.0
        %585 = vmatpush1.msra.mxu0 0.0
        %586 = vmatprep.subr.mxu0 0.0
        %587 = vmatpush1.msra.mxu0 0.0
        %588 = vmatprep.subr.mxu0 0.0
        %589 = vmatpush1.msra.mxu0 0.0
        %590 = vmatprep.subr.mxu0 0.0
        %591 = vmatpush1.msra.mxu0 0.0
        %592 = vmatprep.subr.mxu0 0.0
        %593 = vmatpush1.msra.mxu0 0.0
        %594 = vmatprep.subr.mxu0 0.0
        %595 = vmatpush1.msra.mxu0 0.0
        %596 = vmatprep.subr.mxu0 0.0
        %597 = vmatpush1.msra.mxu0 0.0
        %598 = vmatprep.subr.mxu0 0.0
        %599 = vmatpush1.msra.mxu0 0.0
        %600 = vmatprep.subr.mxu0 0.0
        %601 = vmatpush1.msra.mxu0 0.0
        %602 = vmatprep.subr.mxu0 0.0
        %603 = vmatpush1.msra.mxu0 0.0
        %604 = vmatprep.subr.mxu0 0.0
        %605 = vmatpush1.msra.mxu0 0.0
        %606 = vmatprep.subr.mxu0 0.0
        %607 = vmatpush1.msra.mxu0 0.0
        %608 = vmatprep.subr.mxu0 0.0
        %609 = vmatpush1.msra.mxu0 0.0
        %610 = vmatprep.subr.mxu0 0.0
        %611 = vmatpush1.msra.mxu0 0.0
        %612 = vmatprep.subr.mxu0 0.0
        %613 = vmatpush1.msra.mxu0 0.0
        %614 = vmatprep.subr.mxu0 0.0
        %615 = vmatpush1.msra.mxu0 0.0
        %616 = vmatprep.subr.mxu0 0.0
        %617 = vmatpush1.msra.mxu0 0.0
        %618 = vmatprep.subr.mxu0 0.0
        %619 = vmatpush1.msra.mxu0 0.0
        %620 = vmatprep.subr.mxu0 0.0
        %621 = vmatpush1.msra.mxu0 0.0
        %622 = vmatprep.subr.mxu0 0.0
        %623 = vmatpush1.msra.mxu0 0.0
        %624 = vmatprep.subr.mxu0 0.0
        %625 = vmatpush1.msra.mxu0 0.0
        %626 = vmatprep.subr.mxu0 0.0
        %627 = vmatpush1.msra.mxu0 0.0
        %628 = vmatprep.subr.mxu0 0.0
        %629 = vmatpush1.msra.mxu0 0.0
        %630 = vmatprep.subr.mxu0 0.0
        %631 = vmatpush1.msra.mxu0 0.0
        %632 = vmatprep.subr.mxu0 0.0
        %633 = vmatpush1.msra.mxu0 0.0
        %634 = vmatprep.subr.mxu0 0.0
        %635 = vmatpush1.msra.mxu0 0.0
        %636 = vmatprep.subr.mxu0 0.0
        %637 = vmatpush1.msra.mxu0 0.0
        %638 = vmatprep.subr.mxu0 0.0
        %639 = vmatpush1.msra.mxu0 0.0
        %640 = vmatprep.subr.mxu0 0.0
        %641 = vmatpush1.msra.mxu0 0.0
        %642 = vmatprep.subr.mxu0 0.0
        %643 = vmatpush1.msra.mxu0 0.0
        %644 = vmatprep.mubr.f32.mxu0 0.0
        %645 = vmatmul.mubr.f32.gmra.mrb[0].mxu0 %v417
        %v646 = vpop.f32.mrb[0].mxu0
        %v647 = vadd.f32 %v578, %v646
        %v648 = vpop.f32.mrb[0].mxu0
        %649 = vmatprep.mubr.f32.mxu0 0.0
        %650 = vmatmul.mubr.f32.gmra.mrb[0].mxu0 %v420
        %v651 = vpop.f32.mrb[0].mxu0
        %v652 = vadd.f32 %v578, %v651
        %v653 = vpop.f32.mrb[0].mxu0
        %654 = vdwg.mxu0
        %v655 = vxor.u32 %v647, 2147483648
        %v656 = vxor.u32 %v652, 2147483648
        %v657 = vmul.f32 %v655, 1.442695
        %v658 = vpow.pop %v657
        %v659 = vmul.f32 %v656, 1.442695
        %v660 = vpow.pop %v659
        %v661 = vadd.f32 %v658, 1.0
        %v662 = vadd.f32 %v660, 1.0
        %v663 = vrcp.pop %v661
        %v664 = vmul.f32 1.0, %v663
        %v665 = vrcp.pop %v662
        %v666 = vmul.f32 1.0, %v665
        %667 = vst.msk [vmem:[%s298] sm:$0xff] %vm323, %v664
        %668 = vst.msk [vmem:[%s298 + $0x8] sm:$0xff] %vm323, %v666
        %s669 = scalar_lea.vmem %s284, 16
        %v670 = vld [vmem:[%s669] sm:$0xff]
        %v671 = vld [vmem:[%s669 + $0x8] sm:$0xff]
        %s672 = scalar_lea.vmem %s291, 16
        %v673 = vld [vmem:[%s672] sm:$0xff]
        %v674 = vld [vmem:[%s672 + $0x8] sm:$0xff]
        %v676 = vsel %vm323, %v670, 0
        %v679 = vsel %vm323, %v671, 0
        %681 = vmatprep.subr.mxu0 0.0
        %682 = vmatpush1.msra.mxu0 %v332
        %683 = vmatprep.subr.mxu0 0.0
        %684 = vmatpush1.msra.mxu0 0.0
        %685 = vmatprep.subr.mxu0 0.0
        %686 = vmatpush1.msra.mxu0 0.0
        %687 = vmatprep.subr.mxu0 0.0
        %688 = vmatpush1.msra.mxu0 0.0
        %689 = vmatprep.subr.mxu0 0.0
        %690 = vmatpush1.msra.mxu0 0.0
        %691 = vmatprep.subr.mxu0 0.0
        %692 = vmatpush1.msra.mxu0 0.0
        %693 = vmatprep.subr.mxu0 0.0
        %694 = vmatpush1.msra.mxu0 0.0
        %695 = vmatprep.subr.mxu0 0.0
        %696 = vmatpush1.msra.mxu0 0.0
        %697 = vmatprep.subr.mxu0 0.0
        %698 = vmatpush1.msra.mxu0 0.0
        %699 = vmatprep.subr.mxu0 0.0
        %700 = vmatpush1.msra.mxu0 0.0
        %701 = vmatprep.subr.mxu0 0.0
        %702 = vmatpush1.msra.mxu0 0.0
        %703 = vmatprep.subr.mxu0 0.0
        %704 = vmatpush1.msra.mxu0 0.0
        %705 = vmatprep.subr.mxu0 0.0
        %706 = vmatpush1.msra.mxu0 0.0
        %707 = vmatprep.subr.mxu0 0.0
        %708 = vmatpush1.msra.mxu0 0.0
        %709 = vmatprep.subr.mxu0 0.0
        %710 = vmatpush1.msra.mxu0 0.0
        %711 = vmatprep.subr.mxu0 0.0
        %712 = vmatpush1.msra.mxu0 0.0
        %713 = vmatprep.subr.mxu0 0.0
        %714 = vmatpush1.msra.mxu0 0.0
        %715 = vmatprep.subr.mxu0 0.0
        %716 = vmatpush1.msra.mxu0 0.0
        %717 = vmatprep.subr.mxu0 0.0
        %718 = vmatpush1.msra.mxu0 0.0
        %719 = vmatprep.subr.mxu0 0.0
        %720 = vmatpush1.msra.mxu0 0.0
        %721 = vmatprep.subr.mxu0 0.0
        %722 = vmatpush1.msra.mxu0 0.0
        %723 = vmatprep.subr.mxu0 0.0
        %724 = vmatpush1.msra.mxu0 0.0
        %725 = vmatprep.subr.mxu0 0.0
        %726 = vmatpush1.msra.mxu0 0.0
        %727 = vmatprep.subr.mxu0 0.0
        %728 = vmatpush1.msra.mxu0 0.0
        %729 = vmatprep.subr.mxu0 0.0
        %730 = vmatpush1.msra.mxu0 0.0
        %731 = vmatprep.subr.mxu0 0.0
        %732 = vmatpush1.msra.mxu0 0.0
        %733 = vmatprep.subr.mxu0 0.0
        %734 = vmatpush1.msra.mxu0 0.0
        %735 = vmatprep.subr.mxu0 0.0
        %736 = vmatpush1.msra.mxu0 0.0
        %737 = vmatprep.subr.mxu0 0.0
        %738 = vmatpush1.msra.mxu0 0.0
        %739 = vmatprep.subr.mxu0 0.0
        %740 = vmatpush1.msra.mxu0 0.0
        %741 = vmatprep.subr.mxu0 0.0
        %742 = vmatpush1.msra.mxu0 0.0
        %743 = vmatprep.subr.mxu0 0.0
        %744 = vmatpush1.msra.mxu0 0.0
        %745 = vmatprep.mubr.f32.mxu0 0.0
        %746 = vmatmul.mubr.f32.gmra.mrb[0].mxu0 %v676
        %v747 = vpop.f32.mrb[0].mxu0
        %v748 = vadd.f32 0.0, %v747
        %v749 = vpop.f32.mrb[0].mxu0
        %750 = vmatprep.mubr.f32.mxu0 0.0
        %751 = vmatmul.mubr.f32.gmra.mrb[0].mxu0 %v679
        %v752 = vpop.f32.mrb[0].mxu0
        %v753 = vadd.f32 0.0, %v752
        %v754 = vpop.f32.mrb[0].mxu0
        %755 = vdwg.mxu0
        %v757 = vsel %vm415, %v673, 0
        %v760 = vsel %vm415, %v674, 0
        %762 = vmatprep.subr.mxu0 0.0
        %763 = vmatpush1.msra.mxu0 %v748
        %764 = vmatprep.subr.mxu0 0.0
        %765 = vmatpush1.msra.mxu0 %v753
        %766 = vmatprep.subr.mxu0 0.0
        %767 = vmatpush1.msra.mxu0 0.0
        %768 = vmatprep.subr.mxu0 0.0
        %769 = vmatpush1.msra.mxu0 0.0
        %770 = vmatprep.subr.mxu0 0.0
        %771 = vmatpush1.msra.mxu0 0.0
        %772 = vmatprep.subr.mxu0 0.0
        %773 = vmatpush1.msra.mxu0 0.0
        %774 = vmatprep.subr.mxu0 0.0
        %775 = vmatpush1.msra.mxu0 0.0
        %776 = vmatprep.subr.mxu0 0.0
        %777 = vmatpush1.msra.mxu0 0.0
        %778 = vmatprep.subr.mxu0 0.0
        %779 = vmatpush1.msra.mxu0 0.0
        %780 = vmatprep.subr.mxu0 0.0
        %781 = vmatpush1.msra.mxu0 0.0
        %782 = vmatprep.subr.mxu0 0.0
        %783 = vmatpush1.msra.mxu0 0.0
        %784 = vmatprep.subr.mxu0 0.0
        %785 = vmatpush1.msra.mxu0 0.0
        %786 = vmatprep.subr.mxu0 0.0
        %787 = vmatpush1.msra.mxu0 0.0
        %788 = vmatprep.subr.mxu0 0.0
        %789 = vmatpush1.msra.mxu0 0.0
        %790 = vmatprep.subr.mxu0 0.0
        %791 = vmatpush1.msra.mxu0 0.0
        %792 = vmatprep.subr.mxu0 0.0
        %793 = vmatpush1.msra.mxu0 0.0
        %794 = vmatprep.subr.mxu0 0.0
        %795 = vmatpush1.msra.mxu0 0.0
        %796 = vmatprep.subr.mxu0 0.0
        %797 = vmatpush1.msra.mxu0 0.0
        %798 = vmatprep.subr.mxu0 0.0
        %799 = vmatpush1.msra.mxu0 0.0
        %800 = vmatprep.subr.mxu0 0.0
        %801 = vmatpush1.msra.mxu0 0.0
        %802 = vmatprep.subr.mxu0 0.0
        %803 = vmatpush1.msra.mxu0 0.0
        %804 = vmatprep.subr.mxu0 0.0
        %805 = vmatpush1.msra.mxu0 0.0
        %806 = vmatprep.subr.mxu0 0.0
        %807 = vmatpush1.msra.mxu0 0.0
        %808 = vmatprep.subr.mxu0 0.0
        %809 = vmatpush1.msra.mxu0 0.0
        %810 = vmatprep.subr.mxu0 0.0
        %811 = vmatpush1.msra.mxu0 0.0
        %812 = vmatprep.subr.mxu0 0.0
        %813 = vmatpush1.msra.mxu0 0.0
        %814 = vmatprep.subr.mxu0 0.0
        %815 = vmatpush1.msra.mxu0 0.0
        %816 = vmatprep.subr.mxu0 0.0
        %817 = vmatpush1.msra.mxu0 0.0
        %818 = vmatprep.subr.mxu0 0.0
        %819 = vmatpush1.msra.mxu0 0.0
        %820 = vmatprep.subr.mxu0 0.0
        %821 = vmatpush1.msra.mxu0 0.0
        %822 = vmatprep.subr.mxu0 0.0
        %823 = vmatpush1.msra.mxu0 0.0
        %824 = vmatprep.subr.mxu0 0.0
        %825 = vmatpush1.msra.mxu0 0.0
        %826 = vmatprep.mubr.f32.mxu0 0.0
        %827 = vmatmul.mubr.f32.gmra.mrb[0].mxu0 %v757
        %v828 = vpop.f32.mrb[0].mxu0
        %v829 = vadd.f32 %v413, %v828
        %v830 = vpop.f32.mrb[0].mxu0
        %831 = vmatprep.mubr.f32.mxu0 0.0
        %832 = vmatmul.mubr.f32.gmra.mrb[0].mxu0 %v760
        %v833 = vpop.f32.mrb[0].mxu0
        %v834 = vadd.f32 %v413, %v833
        %v835 = vpop.f32.mrb[0].mxu0
        %836 = vdwg.mxu0
        %v837 = vmax.f32 %v829, 0.0
        %v838 = vmax.f32 %v834, 0.0
        %839 = vmatprep.subr.mxu0 0.0
        %840 = vmatpush1.msra.mxu0 %v302
        %841 = vmatprep.subr.mxu0 0.0
        %842 = vmatpush1.msra.mxu0 %v303
        %843 = vmatprep.subr.mxu0 0.0
        %844 = vmatpush1.msra.mxu0 %v304
        %845 = vmatprep.subr.mxu0 0.0
        %846 = vmatpush1.msra.mxu0 %v305
        %847 = vmatprep.subr.mxu0 0.0
        %848 = vmatpush1.msra.mxu0 %v306
        %849 = vmatprep.subr.mxu0 0.0
        %850 = vmatpush1.msra.mxu0 %v307
        %851 = vmatprep.subr.mxu0 0.0
        %852 = vmatpush1.msra.mxu0 %v308
        %853 = vmatprep.subr.mxu0 0.0
        %854 = vmatpush1.msra.mxu0 %v309
        %855 = vmatprep.subr.mxu0 0.0
        %856 = vmatpush1.msra.mxu0 %v310
        %857 = vmatprep.subr.mxu0 0.0
        %858 = vmatpush1.msra.mxu0 %v311
        %859 = vmatprep.subr.mxu0 0.0
        %860 = vmatpush1.msra.mxu0 %v312
        %861 = vmatprep.subr.mxu0 0.0
        %862 = vmatpush1.msra.mxu0 %v313
        %863 = vmatprep.subr.mxu0 0.0
        %864 = vmatpush1.msra.mxu0 %v314
        %865 = vmatprep.subr.mxu0 0.0
        %866 = vmatpush1.msra.mxu0 %v315
        %867 = vmatprep.subr.mxu0 0.0
        %868 = vmatpush1.msra.mxu0 %v316
        %869 = vmatprep.subr.mxu0 0.0
        %870 = vmatpush1.msra.mxu0 %v317
        %871 = vmatprep.subr.mxu0 0.0
        %872 = vmatpush1.msra.mxu0 0.0
        %873 = vmatprep.subr.mxu0 0.0
        %874 = vmatpush1.msra.mxu0 0.0
        %875 = vmatprep.subr.mxu0 0.0
        %876 = vmatpush1.msra.mxu0 0.0
        %877 = vmatprep.subr.mxu0 0.0
        %878 = vmatpush1.msra.mxu0 0.0
        %879 = vmatprep.subr.mxu0 0.0
        %880 = vmatpush1.msra.mxu0 0.0
        %881 = vmatprep.subr.mxu0 0.0
        %882 = vmatpush1.msra.mxu0 0.0
        %883 = vmatprep.subr.mxu0 0.0
        %884 = vmatpush1.msra.mxu0 0.0
        %885 = vmatprep.subr.mxu0 0.0
        %886 = vmatpush1.msra.mxu0 0.0
        %887 = vmatprep.subr.mxu0 0.0
        %888 = vmatpush1.msra.mxu0 0.0
        %889 = vmatprep.subr.mxu0 0.0
        %890 = vmatpush1.msra.mxu0 0.0
        %891 = vmatprep.subr.mxu0 0.0
        %892 = vmatpush1.msra.mxu0 0.0
        %893 = vmatprep.subr.mxu0 0.0
        %894 = vmatpush1.msra.mxu0 0.0
        %895 = vmatprep.subr.mxu0 0.0
        %896 = vmatpush1.msra.mxu0 0.0
        %897 = vmatprep.subr.mxu0 0.0
        %898 = vmatpush1.msra.mxu0 0.0
        %899 = vmatprep.subr.mxu0 0.0
        %900 = vmatpush1.msra.mxu0 0.0
        %901 = vmatprep.subr.mxu0 0.0
        %902 = vmatpush1.msra.mxu0 0.0
        %903 = vmatprep.mubr.f32.mxu0 0.0
        %904 = vmatmul.mubr.f32.gmra.mrb[0].mxu0 %v837
        %v905 = vpop.f32.mrb[0].mxu0
        %v906 = vadd.f32 0.0, %v905
        %v907 = vpop.f32.mrb[0].mxu0
        %908 = vmatprep.mubr.f32.mxu0 0.0
        %909 = vmatmul.mubr.f32.gmra.mrb[0].mxu0 %v838
        %v910 = vpop.f32.mrb[0].mxu0
        %v911 = vadd.f32 0.0, %v910
        %v912 = vpop.f32.mrb[0].mxu0
        %913 = vdwg.mxu0
        %914 = vmatprep.subr.mxu0 0.0
        %915 = vmatpush1.msra.mxu0 %v906
        %916 = vmatprep.subr.mxu0 0.0
        %917 = vmatpush1.msra.mxu0 %v911
        %918 = vmatprep.subr.mxu0 0.0
        %919 = vmatpush1.msra.mxu0 0.0
        %920 = vmatprep.subr.mxu0 0.0
        %921 = vmatpush1.msra.mxu0 0.0
        %922 = vmatprep.subr.mxu0 0.0
        %923 = vmatpush1.msra.mxu0 0.0
        %924 = vmatprep.subr.mxu0 0.0
        %925 = vmatpush1.msra.mxu0 0.0
        %926 = vmatprep.subr.mxu0 0.0
        %927 = vmatpush1.msra.mxu0 0.0
        %928 = vmatprep.subr.mxu0 0.0
        %929 = vmatpush1.msra.mxu0 0.0
        %930 = vmatprep.subr.mxu0 0.0
        %931 = vmatpush1.msra.mxu0 0.0
        %932 = vmatprep.subr.mxu0 0.0
        %933 = vmatpush1.msra.mxu0 0.0
        %934 = vmatprep.subr.mxu0 0.0
        %935 = vmatpush1.msra.mxu0 0.0
        %936 = vmatprep.subr.mxu0 0.0
        %937 = vmatpush1.msra.mxu0 0.0
        %938 = vmatprep.subr.mxu0 0.0
        %939 = vmatpush1.msra.mxu0 0.0
        %940 = vmatprep.subr.mxu0 0.0
        %941 = vmatpush1.msra.mxu0 0.0
        %942 = vmatprep.subr.mxu0 0.0
        %943 = vmatpush1.msra.mxu0 0.0
        %944 = vmatprep.subr.mxu0 0.0
        %945 = vmatpush1.msra.mxu0 0.0
        %946 = vmatprep.subr.mxu0 0.0
        %947 = vmatpush1.msra.mxu0 0.0
        %948 = vmatprep.subr.mxu0 0.0
        %949 = vmatpush1.msra.mxu0 0.0
        %950 = vmatprep.subr.mxu0 0.0
        %951 = vmatpush1.msra.mxu0 0.0
        %952 = vmatprep.subr.mxu0 0.0
        %953 = vmatpush1.msra.mxu0 0.0
        %954 = vmatprep.subr.mxu0 0.0
        %955 = vmatpush1.msra.mxu0 0.0
        %956 = vmatprep.subr.mxu0 0.0
        %957 = vmatpush1.msra.mxu0 0.0
        %958 = vmatprep.subr.mxu0 0.0
        %959 = vmatpush1.msra.mxu0 0.0
        %960 = vmatprep.subr.mxu0 0.0
        %961 = vmatpush1.msra.mxu0 0.0
        %962 = vmatprep.subr.mxu0 0.0
        %963 = vmatpush1.msra.mxu0 0.0
        %964 = vmatprep.subr.mxu0 0.0
        %965 = vmatpush1.msra.mxu0 0.0
        %966 = vmatprep.subr.mxu0 0.0
        %967 = vmatpush1.msra.mxu0 0.0
        %968 = vmatprep.subr.mxu0 0.0
        %969 = vmatpush1.msra.mxu0 0.0
        %970 = vmatprep.subr.mxu0 0.0
        %971 = vmatpush1.msra.mxu0 0.0
        %972 = vmatprep.subr.mxu0 0.0
        %973 = vmatpush1.msra.mxu0 0.0
        %974 = vmatprep.subr.mxu0 0.0
        %975 = vmatpush1.msra.mxu0 0.0
        %976 = vmatprep.subr.mxu0 0.0
        %977 = vmatpush1.msra.mxu0 0.0
        %978 = vmatprep.mubr.f32.mxu0 0.0
        %979 = vmatmul.mubr.f32.gmra.mrb[0].mxu0 %v757
        %v980 = vpop.f32.mrb[0].mxu0
        %v981 = vadd.f32 %v578, %v980
        %v982 = vpop.f32.mrb[0].mxu0
        %983 = vmatprep.mubr.f32.mxu0 0.0
        %984 = vmatmul.mubr.f32.gmra.mrb[0].mxu0 %v760
        %v985 = vpop.f32.mrb[0].mxu0
        %v986 = vadd.f32 %v578, %v985
        %v987 = vpop.f32.mrb[0].mxu0
        %988 = vdwg.mxu0
        %v989 = vxor.u32 %v981, 2147483648
        %v990 = vxor.u32 %v986, 2147483648
        %v991 = vmul.f32 %v989, 1.442695
        %v992 = vpow.pop %v991
        %v993 = vmul.f32 %v990, 1.442695
        %v994 = vpow.pop %v993
        %v995 = vadd.f32 %v992, 1.0
        %v996 = vadd.f32 %v994, 1.0
        %v997 = vrcp.pop %v995
        %v998 = vmul.f32 1.0, %v997
        %v999 = vrcp.pop %v996
        %v1000 = vmul.f32 1.0, %v999
        %s1001 = scalar_lea.vmem %s298, 16
        %1002 = vst.msk [vmem:[%s1001] sm:$0xff] %vm323, %v998
        %1003 = vst.msk [vmem:[%s1001 + $0x8] sm:$0xff] %vm323, %v1000
        %s1004 = smul.u32 2, %s18
        %p1005 = scmp.lt.s32.totalorder %s1004, 3
        %s1006 = scalar_select %p1005, %s1004, 3
        %s1007 = smul.addr %s1006, 2
        %s1008 = smul.addr %s1007, 8
        %s1009 = scalar_lea.vmem %s6, %s1008
        // Predicated region
        $region49: #{forward.1} parent=43 // pred_check
          %p1010 = pneg %p172
        $region50: #{forward.1} parent=43 // pred_check_branch
          %1012 = sbr.rel (%p1010) target = $region52
        $region51: #{forward.1} parent=43 // pred_region
          %s1013 = smul.u32 2, %s18
        $region52: #{forward.1} parent=43 // pred_fallthru
          _
      $region44: #{forward.1} parent=5 // pred_fallthru
        _
      %p1014 = scmp.le.s32.totalorder 2, %s13
      // Predicated region
      $region53: #{forward.1} parent=5 // pred_check
        %p1015 = pneg %p1014
      $region54: #{forward.1} parent=5 // pred_check_branch
        %1017 = sbr.rel (%p1015) target = $region56
      $region55: #{forward.1} parent=5 // pred_region
        %s1018 = ssub.s32 %s13, 2
        // Predicated region
        $region57: #{forward.1} parent=55 // pred_check
          %p1019 = pneg %p178
        $region58: #{forward.1} parent=55 // pred_check_branch
          %1021 = sbr.rel (%p1019) target = $region60
        $region59: #{forward.1} parent=55 // pred_region
          %s1022 = smul.u32 2, %s19
          %p1023 = scmp.lt.s32.totalorder %s1022, 3
          %s1024 = scalar_select %p1023, %s1022, 3
          %s1025 = smul.addr %s1024, 2
          %s1026 = smul.addr %s1025, 8
          %s1027 = scalar_lea.vmem %s6, %s1026
        $region60: #{forward.1} parent=55 // pred_fallthru
          _
      $region56: #{forward.1} parent=5 // pred_fallthru
        _
    $region6: #{forward.1} parent=1 // loop_footer
      %s17 = sadd.s32 1, %s13
    $region7: #{forward.1} parent=1 // loop_footer_branch
      %12 = sbr.rel target = $region3
    $region8: #{forward.1} parent=1 // loop_exit
      _
    %1028 = vsyncpa [#allocation3], 1
    %s1029 = scalar_lea.sflag [#allocation3], 1
    %1030 = vsyncpa %s1029, 1

</llo_original>
